<compile_context>
chip_gen: v7x
topology: tpu7x:2x2x1
jax: 0.10.0
libtpu: 0.0.40
codegen_flags: <defaults>
</compile_context>

<pallas_src>
import jax
import jax.numpy as jnp
from jax.experimental import pallas as pl
from jax.experimental.pallas import tpu as pltpu

_MIB = 1024 * 1024
_LANE = 128
_SUBLANE = 8


def _round_up(x: int, m: int) -> int:
    return -(-x // m) * m


def _round_down(x: int, m: int) -> int:
    return (x // m) * m


def _vmem_budgets() -> tuple[int, int]:
    """Per-generation (x_double_buffer_budget, vmem_limit_bytes)."""
    cap = 64 * _MIB  # conservative default = v7x per-TC VMEM
    try:
        info = pltpu.get_tpu_info()
        cap = int(getattr(info, "vmem_capacity_bytes", cap)) or cap
    except Exception:
        pass
    # v5e/v6e (128 MiB): limit ~108 MiB, X budget ~96 MiB.
    # v7x (64 MiB/TC):   limit  48 MiB,  X budget  36 MiB.
    vmem_limit = max(32 * _MIB, min(cap - 16 * _MIB, (cap * 85) // 100))
    x_budget = max(16 * _MIB, vmem_limit - 12 * _MIB)
    return int(x_budget), int(vmem_limit)


def _pick_tiles(batch: int, in_dims: int, x_budget: int) -> tuple[int, int]:
    """(tb, tk): batch tile and feature (K) tile, padding-aware, byte-sized."""
    d_pad = _round_up(in_dims, _LANE)                 # lane padding of a row
    min_tb = batch if batch <= _LANE else _LANE
    min_tb_pad = _round_up(min_tb, _SUBLANE)          # sublane padding

    # --- Case 1: whole feature dim fits in one K block even at the minimum
    #     batch tile -> no K tiling, grow tb to fill the byte budget.
    if 2 * min_tb_pad * d_pad * 4 <= x_budget:
        if batch <= _LANE:
            return batch, in_dims                     # single full block
        tb = _round_down(x_budget // (2 * d_pad * 4), _LANE)
        tb = max(_LANE, tb)
        tb = min(tb, _round_down(batch, _LANE))
        if batch >= 2 * _LANE:
            # Guarantee >=2 grid steps: megacore sharding on v7x and
            # double-buffer overlap everywhere.
            tb = min(tb, max(_LANE, _round_down(batch // 2, _LANE)))
        return tb, in_dims

    # --- Case 2: in_dims too large for a single double-buffered block
    #     (huge-D regime) -> tile K as well.
    tb = min_tb
    tk = _round_down(x_budget // (2 * min_tb_pad * 4), _LANE)
    tk = max(_LANE, tk)
    return tb, tk


def _make_kernel(in_dims: int, tk: int):
    rem = in_dims % tk  # width of the partial last K block (0 if none)

    def kernel(x_ref, w_ref, b_ref, o_ref):
        # x_ref: (TB, TK) VMEM (streamed), w_ref: (1, TK) VMEM,
        # b_ref: (1, 1) SMEM scalar, o_ref: (1, TB) VMEM (resident across K).
        k = pl.program_id(1)

        @pl.when(k == 0)
        def _init():
            o_ref[...] = jnp.full(o_ref.shape, b_ref[0, 0], o_ref.dtype)

        x = x_ref[...]
        w = w_ref[...]
        if rem:
            # Partial last K block: zero lanes past in_dims in BOTH operands so
            # unspecified VMEM padding (possibly NaN/Inf) cannot leak into the
            # reduction (NaN * 0 == NaN).
            valid = jnp.where(k == pl.num_programs(1) - 1, rem, tk)
            col_x = jax.lax.broadcasted_iota(jnp.int32, x.shape, 1)
            col_w = jax.lax.broadcasted_iota(jnp.int32, w.shape, 1)
            x = jnp.where(col_x < valid, x, 0.0)
            w = jnp.where(col_w < valid, w, 0.0)

        # Lane-dense MXU result: (1, TK) x (TB, TK)^T -> (1, TB) row.
        # TODO(synk): on v7x benchmark the natural orientation
        # jnp.dot(x, w.T) -> (TB, 1) in case the transposed-RHS push path
        # becomes the binding slot under 3.2 TB/s HBM.
        o_ref[...] += jax.lax.dot_general(
            w, x,
            dimension_numbers=(((1,), (1,)), ((), ())),
            preferred_element_type=jnp.float32,
        )

    return kernel


def linear_regression_forward(x: jax.Array, w: jax.Array, b: jax.Array) -> jax.Array:
    """x: (batch, in_dims) f32; w: (in_dims,) f32; b: (1,) f32 -> (batch,) f32."""
    batch, in_dims = x.shape
    x = x.astype(jnp.float32)
    w_row = w.reshape(1, in_dims).astype(jnp.float32)   # (1, D) matmul operand
    b2d = b.reshape(1, 1).astype(jnp.float32)

    x_budget, vmem_limit = _vmem_budgets()
    tb, tk = _pick_tiles(batch, in_dims, x_budget)
    grid = (pl.cdiv(batch, tb), pl.cdiv(in_dims, tk))
    # TODO(synk): if numerics allow upstream, stream X/w as bf16 end-to-end
    # (keep f32 accumulation) — the only remaining >=2x lever on this
    # HBM-bound kernel.  Not done here to match the f32 PyTorch reference.

    out = pl.pallas_call(
        _make_kernel(in_dims, tk),
        out_shape=jax.ShapeDtypeStruct((1, batch), jnp.float32),
        grid_spec=pltpu.PrefetchScalarGridSpec(
            num_scalar_prefetch=0,
            grid=grid,
            in_specs=[
                pl.BlockSpec((tb, tk), lambda i, k: (i, k)),   # X: streamed
                pl.BlockSpec((1, tk), lambda i, k: (0, k)),    # w: per-K tile
                pl.BlockSpec(memory_space=pltpu.MemorySpace.SMEM),  # b scalar
            ],
            out_specs=pl.BlockSpec((1, tb), lambda i, k: (0, i)),   # lane-dense
        ),
        compiler_params=pltpu.CompilerParams(
            dimension_semantics=("parallel", "arbitrary"),
            vmem_limit_bytes=int(vmem_limit),
        ),
        cost_estimate=pl.CostEstimate(
            flops=2 * batch * in_dims,
            transcendentals=0,
            bytes_accessed=4 * (batch * in_dims + in_dims + batch + 1),
        ),
    )(x, w_row, b2d)

    return out[0]  # (batch,) — matches PyTorch output shape for out_dims=1


if __name__ == "__main__":
    batch, in_dims, out_dims = 8, 32, 1

    key = jax.random.PRNGKey(0)
    kx, kw, kb = jax.random.split(key, 3)

    # Deterministic "randn"-style init (mirrors torch.randn shapes in __init__).
    x = jax.random.normal(kx, (batch, in_dims), dtype=jnp.float32)
    w = jax.random.normal(kw, (in_dims, out_dims), dtype=jnp.float32).squeeze()  # (in_dims,)
    b = jax.random.normal(kb, (out_dims,), dtype=jnp.float32)                    # (1,)

    y = linear_regression_forward(x, w, b)
    y = jax.block_until_ready(y)

    # Correctness check vs. plain JAX reference.
    y_ref = jnp.matmul(x, w) + b
    assert y.shape == (batch,), y.shape
    assert jnp.allclose(y, y_ref, atol=1e-5, rtol=1e-5), (y, y_ref)

    print("KERNEL_OK")
</pallas_src>

<mosaic_0001>
module attributes {stable_mosaic.version = 11 : i64} {
  func.func @kernel(%arg0: i32, %arg1: i32, %arg2: memref<8x32xf32, #tpu.memory_space<vmem>>, %arg3: memref<1x32xf32, #tpu.memory_space<vmem>>, %arg4: memref<1x1xf32, #tpu.memory_space<smem>>, %arg5: memref<1x8xf32, #tpu.memory_space<vmem>>) attributes {dimension_semantics = [#tpu.dimension_semantics<parallel>, #tpu.dimension_semantics<arbitrary>], iteration_bounds = array<i64: 1, 1>, scalar_prefetch = 0 : i64, scratch_operands = 0 : i64, tpu.core_type = #tpu.core_type<tc>, window_params = [{transform_indices = @transform_0, window_bounds = array<i64: 8, 32>}, {transform_indices = @transform_1, window_bounds = array<i64: 1, 32>}, {transform_indices = @transform_2, window_bounds = array<i64: 1, 1>}, {transform_indices = @transform_3, window_bounds = array<i64: 1, 8>}]} {
    %c0_i32 = arith.constant 0 : i32
    %0 = arith.cmpi eq, %arg1, %c0_i32 : i32
    %1 = arith.extui %0 : i1 to i32
    %c0_i32_0 = arith.constant 0 : i32
    %2 = arith.cmpi ne, %1, %c0_i32_0 : i32
    scf.if %2 {
      %c0_8 = arith.constant 0 : index
      %c0_9 = arith.constant 0 : index
      %9 = memref.load %arg4[%c0_8, %c0_9] : memref<1x1xf32, #tpu.memory_space<smem>>
      %10 = vector.broadcast %9 : f32 to vector<1x8xf32>
      %c0_10 = arith.constant 0 : index
      %c0_11 = arith.constant 0 : index
      %11 = vector.load %arg5[%c0_10, %c0_11] : memref<1x8xf32, #tpu.memory_space<vmem>>, vector<1x8xf32>
      tpu.vector_store %arg5[%c0_10, %c0_11], %10 {strides = array<i32>} : memref<1x8xf32, #tpu.memory_space<vmem>>, vector<1x8xf32>,
    } else {
    }
    %c0 = arith.constant 0 : index
    %c0_1 = arith.constant 0 : index
    %3 = vector.load %arg2[%c0, %c0_1] : memref<8x32xf32, #tpu.memory_space<vmem>>, vector<8x32xf32>
    %c0_2 = arith.constant 0 : index
    %c0_3 = arith.constant 0 : index
    %4 = vector.load %arg3[%c0_2, %c0_3] : memref<1x32xf32, #tpu.memory_space<vmem>>, vector<1x32xf32>
    %c0_4 = arith.constant 0 : index
    %c0_5 = arith.constant 0 : index
    %5 = vector.load %arg5[%c0_4, %c0_5] : memref<1x8xf32, #tpu.memory_space<vmem>>, vector<1x8xf32>
    %cst = arith.constant dense<0.000000e+00> : vector<1x8xf32>
    %6 = tpu.matmul %4, %3, %cst {dimension_numbers = #tpu.dot_dimension_numbers<[1], [1], [0], [0], [0, 0, 1, 0], [], []>} : vector<1x32xf32>, vector<8x32xf32>, vector<1x8xf32> -> vector<1x8xf32>
    %7 = arith.addf %5, %6 : vector<1x8xf32>
    %c0_6 = arith.constant 0 : index
    %c0_7 = arith.constant 0 : index
    %8 = vector.load %arg5[%c0_6, %c0_7] : memref<1x8xf32, #tpu.memory_space<vmem>>, vector<1x8xf32>
    tpu.vector_store %arg5[%c0_6, %c0_7], %7 {strides = array<i32>} : memref<1x8xf32, #tpu.memory_space<vmem>>, vector<1x8xf32>,
    return
  }
  func.func @transform_0(%arg0: i32, %arg1: i32) -> (i32, i32) {
    %c0_i32 = arith.constant 0 : i32
    return %arg0, %arg1 : i32, i32
  }
  func.func @transform_1(%arg0: i32, %arg1: i32) -> (i32, i32) {
    %c0_i32 = arith.constant 0 : i32
    %c0_i32_0 = arith.constant 0 : i32
    return %c0_i32, %arg1 : i32, i32
  }
  func.func @transform_2(%arg0: i32, %arg1: i32) -> (i32, i32) {
    %c0_i32 = arith.constant 0 : i32
    %c0_i32_0 = arith.constant 0 : i32
    %c0_i32_1 = arith.constant 0 : i32
    return %c0_i32, %c0_i32_0 : i32, i32
  }
  func.func @transform_3(%arg0: i32, %arg1: i32) -> (i32, i32) {
    %c0_i32 = arith.constant 0 : i32
    %c0_i32_0 = arith.constant 0 : i32
    return %c0_i32, %arg0 : i32, i32
  }
}

</mosaic_0001>

<llo_original>
// kernel: tpu_custom_call.1
$region0: #{tpu_custom_call.1}
  #allocation0 [shape = 'u32[]', space=smem, size = 0x4, offset = 0x4, fixed_abs, tag = 'smem constant byte address 0x4 - core index']
  #allocation1 [shape = 'u32[144,128]{1,0:T(1,128)}', space=vmem, size = 0x12000, scoped, tag = 'internal scratch']
  #allocation2 [shape = 'f32[1,1]{1,0:T(1,128)S(6)}', space=smem, size = 0x200, scoped, tag = 'scoped memory for tpu_custom_call.1']
  %s0 = inlined_call_operand.hbm [shape: f32[8,32], index: 0, kind: input, shape index: {}]
  %s1 = inlined_call_operand.vmem [shape: f32[1,32], index: 1, kind: input, shape index: {}]
  %s2 = inlined_call_operand.<no memory space> [shape: f32[1,1], index: 2, kind: input, shape index: {}]
  %s3 = inlined_call_operand.hbm [shape: f32[1,8], index: 3, kind: output, shape index: {}]
  %s4 = sld [smem:[#allocation0]]
  $region30: #{tpu_custom_call.1} parent=0
    _
  %s6 = ssub.s32 1, %s4
  %s7 = scalar_select 0, %s6, %s4
  %8 = sst [smem:[#allocation2]] %s2
  $region1: #{tpu_custom_call.1} parent=0
    #allocation3 [shape = 'u8[4096]{0}', space=vmem, size = 0x1000, scoped, tag = 'input window, operand 0, single buffered']
    #allocation4 [shape = 's32[1]{0}', space=sflag, size = 0x4, scoped, tag = 'scoped memory for tpu_custom_call.1']
    #allocation5 [shape = 's32[1]{0}', space=sflag, size = 0x4, scoped, tag = 'scoped memory for tpu_custom_call.1']
    #allocation6 [shape = 'u8[512]{0}', space=vmem, size = 0x400, scoped, tag = 'output window, operand 0, single buffered']
    %9 = vsyncpa [#allocation4], 0
    %10 = vsyncpa [#allocation5], 0
    // Predicated region
    $region2: #{tpu_custom_call.1} parent=1 // pred_check
      _
    $region3: #{tpu_custom_call.1} parent=1 // pred_check_branch
      %12 = sbr.rel (0) target = $region5
    $region4: #{tpu_custom_call.1} parent=1 // pred_region
      %s14 = ssub.s32 128, 128
      %15 = vsyncadd [#allocation4], %s14
      %s17 = sshll.u32 [#allocation3], 4
      %s18 = int_to_ptr.vmem [resolvable:$true] %s17
      %20 = dma.hbm_to_vmem [thread:$0]  %s0, 128, %s18, [#allocation4]
    $region5: #{tpu_custom_call.1} parent=1 // pred_fallthru
      _
    // Predicated region
    $region6: #{tpu_custom_call.1} parent=1 // pred_check
      _
    $region7: #{tpu_custom_call.1} parent=1 // pred_check_branch
      %22 = sbr.rel (0) target = $region9
    $region8: #{tpu_custom_call.1} parent=1 // pred_region
      _
    $region9: #{tpu_custom_call.1} parent=1 // pred_fallthru
      _
    // Predicated region
    $region10: #{tpu_custom_call.1} parent=1 // pred_check
      _
    $region11: #{tpu_custom_call.1} parent=1 // pred_check_branch
      %24 = sbr.rel (0) target = $region13
    $region12: #{tpu_custom_call.1} parent=1 // pred_region
      _
    $region13: #{tpu_custom_call.1} parent=1 // pred_fallthru
      _
    // Predicated region
    $region14: #{tpu_custom_call.1} parent=1 // pred_check
      _
    $region15: #{tpu_custom_call.1} parent=1 // pred_check_branch
      %26 = sbr.rel (0) target = $region17
    $region16: #{tpu_custom_call.1} parent=1 // pred_region
      %27 = dma.done [#allocation4], 128
    $region17: #{tpu_custom_call.1} parent=1 // pred_fallthru
      _
    %p28 = scmp.eq.s32.totalorder 0, 0
    // Predicated region
    $region18: #{tpu_custom_call.1} parent=1 // pred_check
      %p29 = pneg %p28
    $region19: #{tpu_custom_call.1} parent=1 // pred_check_branch
      %31 = sbr.rel (%p29) target = $region21
    $region20: #{tpu_custom_call.1} parent=1 // pred_region
      %s32 = sld [smem:[#allocation2]]
      %v33 = vstv %s32
      %vm34 = vcmask 57344
      %35 = vst.msk [vmem:[#allocation6] sm:$0x1] %vm34, %v33
    $region21: #{tpu_custom_call.1} parent=1 // pred_fallthru
      _
    %v36 = vld [vmem:[#allocation3] sm:$0xff]
    %v37 = vld [vmem:[%s1] sm:$0x1]
    %v38 = vld [vmem:[#allocation6] sm:$0x1]
    %vm39 = vcmask 261120
    %v41 = vsel %vm39, %v37, 0
    %v44 = vsel %vm39, %v36, 0
    %46 = vmatprep.subr.mxu0 0.0
    %47 = vmatpush1.xpose.msra.mxu0 %v44
    %48 = vmatprep.subr.mxu0 0.0
    %49 = vmatpush1.xpose.msra.mxu0 0.0
    %50 = vmatprep.subr.mxu0 0.0
    %51 = vmatpush1.xpose.msra.mxu0 0.0
    %52 = vmatprep.subr.mxu0 0.0
    %53 = vmatpush1.xpose.msra.mxu0 0.0
    %54 = vmatprep.subr.mxu0 0.0
    %55 = vmatpush1.xpose.msra.mxu0 0.0
    %56 = vmatprep.subr.mxu0 0.0
    %57 = vmatpush1.xpose.msra.mxu0 0.0
    %58 = vmatprep.subr.mxu0 0.0
    %59 = vmatpush1.xpose.msra.mxu0 0.0
    %60 = vmatprep.subr.mxu0 0.0
    %61 = vmatpush1.xpose.msra.mxu0 0.0
    %62 = vmatprep.subr.mxu0 0.0
    %63 = vmatpush1.xpose.msra.mxu0 0.0
    %64 = vmatprep.subr.mxu0 0.0
    %65 = vmatpush1.xpose.msra.mxu0 0.0
    %66 = vmatprep.subr.mxu0 0.0
    %67 = vmatpush1.xpose.msra.mxu0 0.0
    %68 = vmatprep.subr.mxu0 0.0
    %69 = vmatpush1.xpose.msra.mxu0 0.0
    %70 = vmatprep.subr.mxu0 0.0
    %71 = vmatpush1.xpose.msra.mxu0 0.0
    %72 = vmatprep.subr.mxu0 0.0
    %73 = vmatpush1.xpose.msra.mxu0 0.0
    %74 = vmatprep.subr.mxu0 0.0
    %75 = vmatpush1.xpose.msra.mxu0 0.0
    %76 = vmatprep.subr.mxu0 0.0
    %77 = vmatpush1.xpose.msra.mxu0 0.0
    %78 = vmatprep.subr.mxu0 0.0
    %79 = vmatpush1.xpose.msra.mxu0 0.0
    %80 = vmatprep.subr.mxu0 0.0
    %81 = vmatpush1.xpose.msra.mxu0 0.0
    %82 = vmatprep.subr.mxu0 0.0
    %83 = vmatpush1.xpose.msra.mxu0 0.0
    %84 = vmatprep.subr.mxu0 0.0
    %85 = vmatpush1.xpose.msra.mxu0 0.0
    %86 = vmatprep.subr.mxu0 0.0
    %87 = vmatpush1.xpose.msra.mxu0 0.0
    %88 = vmatprep.subr.mxu0 0.0
    %89 = vmatpush1.xpose.msra.mxu0 0.0
    %90 = vmatprep.subr.mxu0 0.0
    %91 = vmatpush1.xpose.msra.mxu0 0.0
    %92 = vmatprep.subr.mxu0 0.0
    %93 = vmatpush1.xpose.msra.mxu0 0.0
    %94 = vmatprep.subr.mxu0 0.0
    %95 = vmatpush1.xpose.msra.mxu0 0.0
    %96 = vmatprep.subr.mxu0 0.0
    %97 = vmatpush1.xpose.msra.mxu0 0.0
    %98 = vmatprep.subr.mxu0 0.0
    %99 = vmatpush1.xpose.msra.mxu0 0.0
    %100 = vmatprep.subr.mxu0 0.0
    %101 = vmatpush1.xpose.msra.mxu0 0.0
    %102 = vmatprep.subr.mxu0 0.0
    %103 = vmatpush1.xpose.msra.mxu0 0.0
    %104 = vmatprep.subr.mxu0 0.0
    %105 = vmatpush1.xpose.msra.mxu0 0.0
    %106 = vmatprep.subr.mxu0 0.0
    %107 = vmatpush1.xpose.msra.mxu0 0.0
    %108 = vmatprep.subr.mxu0 0.0
    %109 = vmatpush1.xpose.msra.mxu0 0.0
    %110 = vmatprep.mubr.f32.mxu0 0.0
    %111 = vmatmul.mubr.f32.gmra.mrb[0].mxu0 %v41
    %v112 = vpop.f32.mrb[0].mxu0
    %v113 = vadd.f32 0.0, %v112
    %v114 = vpop.f32.mrb[0].mxu0
    %115 = vdwg.mxu0
    %v116 = vadd.f32 %v38, %v113
    %vm117 = vcmask 57344
    %118 = vst.msk [vmem:[#allocation6] sm:$0x1] %vm117, %v116
    // Predicated region
    $region22: #{tpu_custom_call.1} parent=1 // pred_check
      _
    $region23: #{tpu_custom_call.1} parent=1 // pred_check_branch
      %120 = sbr.rel (0) target = $region25
    $region24: #{tpu_custom_call.1} parent=1 // pred_region
      %s122 = ssub.s32 16, 16
      %123 = vsyncadd [#allocation5], %s122
      %s125 = sshll.u32 [#allocation6], 4
      %s126 = int_to_ptr.vmem [resolvable:$true] %s125
      %128 = dma.vmem_to_hbm [thread:$0]  %s126, 16, %s3, [#allocation5]
    $region25: #{tpu_custom_call.1} parent=1 // pred_fallthru
      _
    // Predicated region
    $region26: #{tpu_custom_call.1} parent=1 // pred_check
      _
    $region27: #{tpu_custom_call.1} parent=1 // pred_check_branch
      %130 = sbr.rel (0) target = $region29
    $region28: #{tpu_custom_call.1} parent=1 // pred_region
      %131 = dma.done [#allocation5], 16
    $region29: #{tpu_custom_call.1} parent=1 // pred_fallthru
      _
    %132 = vsyncpa [#allocation4], 1
    %133 = vsyncpa [#allocation5], 1

</llo_original>
